<compile_context>
chip_gen: v6e
topology: v6e:2x2x1
jax: 0.10.0
libtpu: 0.0.40
codegen_flags: <defaults>
</compile_context>

<pallas_src>
import functools

import jax
import jax.numpy as jnp
from jax.experimental import pallas as pl
from jax.experimental.pallas import tpu as pltpu


def _vae_kernel(x_ref, we_ref, be_ref, wd_ref, bd_ref, noise_ref, out_ref):
    zp = noise_ref.shape[1]

    # --- encode: one fused matmul -> [TB, 2*Zp] f32 accumulator
    latent = jnp.dot(x_ref[...], we_ref[...],
                     preferred_element_type=jnp.float32) + be_ref[...]
    mu = latent[:, :zp]          # static, lane-aligned slices (free)
    log_sigma = latent[:, zp:]

    # --- bottleneck (f32): z = exp(log_sigma) * noise + mu
    z = jnp.exp(log_sigma) * noise_ref[...] + mu                      # [TB, Zp] f32

    # --- decode: bf16 matmul, f32 accumulation
    out = jnp.dot(z.astype(wd_ref.dtype), wd_ref[...],
                  preferred_element_type=jnp.float32) + bd_ref[...]   # [TB, D]
    out_ref[...] = out.astype(out_ref.dtype)


def vae_forward(x, params, noise):
    """Fused VAE forward.

    x:      [B, D] float32 (cast to bf16 for the MXU inside the wrapper)
    noise:  [B, Z] float32 standard-normal (role of torch.randn_like(mu))
    params: dict from init_params (bf16 weights, f32 biases, latent padded to Zp)
    """
    B, D = x.shape
    two_zp = params["w_enc"].shape[1]
    Zp = two_zp // 2
    Z = noise.shape[1]

    # Pad noise columns with zeros up to Zp (padded z columns hit zero decoder
    # rows, so the result is unchanged).
    if Z < Zp:
        noise = jnp.pad(noise, ((0, 0), (0, Zp - Z)))

    # Batch tile size: 128 rows per grid step when possible (full MXU M on v5e).
    TB = 128 if B % 128 == 0 else B
    assert B % TB == 0 and TB % 8 == 0, "batch must tile to a multiple of 8"
    grid = (pl.cdiv(B, TB),)

    x_bf16 = x.astype(jnp.bfloat16)

    cost = pl.CostEstimate(
        flops=2 * B * D * two_zp + 2 * B * Zp * D,
        transcendentals=B * Zp,
        bytes_accessed=(x_bf16.size * 2 + noise.size * 4
                        + params["w_enc"].size * 2 + params["w_dec"].size * 2
                        + params["b_enc"].size * 4 + params["b_dec"].size * 4
                        + B * D * 4),
    )

    return pl.pallas_call(
        _vae_kernel,
        out_shape=jax.ShapeDtypeStruct((B, D), jnp.float32),
        grid_spec=pltpu.PrefetchScalarGridSpec(
            num_scalar_prefetch=0,
            grid=grid,
            in_specs=[
                pl.BlockSpec((TB, D), lambda i: (i, 0)),        # x tile
                pl.BlockSpec((D, two_zp), lambda i: (0, 0)),    # encoder W (resident)
                pl.BlockSpec((1, two_zp), lambda i: (0, 0)),    # encoder b (resident)
                pl.BlockSpec((Zp, D), lambda i: (0, 0)),        # decoder W (resident)
                pl.BlockSpec((1, D), lambda i: (0, 0)),         # decoder b (resident)
                pl.BlockSpec((TB, Zp), lambda i: (i, 0)),       # noise tile
            ],
            out_specs=pl.BlockSpec((TB, D), lambda i: (i, 0)),
        ),
        compiler_params=pltpu.CompilerParams(
            dimension_semantics=("parallel",),
            vmem_limit_bytes=64 << 20,
        ),
        cost_estimate=cost,
    )(x_bf16, params["w_enc"], params["b_enc"],
      params["w_dec"], params["b_dec"], noise)


def init_params(key, input_dim, bottleneck_dim):
    """PyTorch-Linear-style init, fused + lane-padded + bf16 for the kernel."""
    Z = bottleneck_dim
    Zp = 128 * pl.cdiv(Z, 128)          # pad latent to full lane width
    D = input_dim

    k_enc_w, k_enc_b, k_dec_w, k_dec_b = jax.random.split(key, 4)

    # encoder: Linear(D, 2Z); torch weight is [out, in]
    eb = 1.0 / jnp.sqrt(D)
    w_enc = jax.random.uniform(k_enc_w, (2 * Z, D), jnp.float32, -eb, eb)
    b_enc = jax.random.uniform(k_enc_b, (2 * Z,), jnp.float32, -eb, eb)
    # decoder: Linear(Z, D)
    db = 1.0 / jnp.sqrt(Z)
    w_dec = jax.random.uniform(k_dec_w, (D, Z), jnp.float32, -db, db)
    b_dec = jax.random.uniform(k_dec_b, (D,), jnp.float32, -db, db)

    w_enc_t = w_enc.T                    # [D, 2Z]:  cols [:Z]=mu, [Z:]=log_sigma

    # Fused, padded encoder weight [D, 2*Zp]: mu cols at [:Z], log_sigma cols at
    # [Zp:Zp+Z], zeros elsewhere (matches torch.split(dim=1) after padding).
    w_enc_p = jnp.zeros((D, 2 * Zp), jnp.float32)
    w_enc_p = w_enc_p.at[:, :Z].set(w_enc_t[:, :Z])
    w_enc_p = w_enc_p.at[:, Zp:Zp + Z].set(w_enc_t[:, Z:])
    b_enc_p = jnp.zeros((1, 2 * Zp), jnp.float32)
    b_enc_p = b_enc_p.at[0, :Z].set(b_enc[:Z])
    b_enc_p = b_enc_p.at[0, Zp:Zp + Z].set(b_enc[Z:])

    # Padded decoder weight [Zp, D]: rows [Z:] are zero -> padded z cols inert.
    w_dec_p = jnp.zeros((Zp, D), jnp.float32).at[:Z, :].set(w_dec.T)

    return {
        "w_enc": w_enc_p.astype(jnp.bfloat16),
        "b_enc": b_enc_p,                       # f32 (added post-accumulation)
        "w_dec": w_dec_p.astype(jnp.bfloat16),
        "b_dec": b_dec[None, :],                # f32
    }


def vae_reference(x, params, noise):
    """Pure-JAX reference mirroring the kernel's bf16/f32 dtype behavior."""
    two_zp = params["w_enc"].shape[1]
    Zp = two_zp // 2
    Z = noise.shape[1]
    if Z < Zp:
        noise = jnp.pad(noise, ((0, 0), (0, Zp - Z)))
    x16 = x.astype(jnp.bfloat16)
    latent = jnp.dot(x16, params["w_enc"],
                     preferred_element_type=jnp.float32) + params["b_enc"]
    mu, log_sigma = latent[:, :Zp], latent[:, Zp:]
    z = jnp.exp(log_sigma) * noise + mu
    return jnp.dot(z.astype(jnp.bfloat16), params["w_dec"],
                   preferred_element_type=jnp.float32) + params["b_dec"]


if __name__ == "__main__":
    BATCH = 256          # two 128-row batch tiles -> grid=(2,)
    INPUT_DIM = 128
    BOTTLENECK_DIM = 64  # padded to 128 lanes inside init_params

    key = jax.random.PRNGKey(0)
    k_x, k_noise, k_params = jax.random.split(key, 3)

    x = jax.random.normal(k_x, (BATCH, INPUT_DIM), jnp.float32)
    # torch.randn_like(mu) -> explicit standard-normal noise passed into the kernel.
    noise = jax.random.normal(k_noise, (BATCH, BOTTLENECK_DIM), jnp.float32)
    params = init_params(k_params, INPUT_DIM, BOTTLENECK_DIM)

    out = vae_forward(x, params, noise)
    out = jax.block_until_ready(out)

    ref = vae_reference(x, params, noise)
    assert out.shape == (BATCH, INPUT_DIM)
    assert jnp.allclose(out, ref, atol=2e-2, rtol=2e-2), "mismatch vs reference"

    print("KERNEL_OK")
</pallas_src>

<mosaic_0001>
module attributes {stable_mosaic.version = 11 : i64} {
  func.func @_vae_kernel(%arg0: i32, %arg1: memref<128x128xbf16, #tpu.memory_space<vmem>>, %arg2: memref<128x256xbf16, #tpu.memory_space<vmem>>, %arg3: memref<1x256xf32, #tpu.memory_space<vmem>>, %arg4: memref<128x128xbf16, #tpu.memory_space<vmem>>, %arg5: memref<1x128xf32, #tpu.memory_space<vmem>>, %arg6: memref<128x128xf32, #tpu.memory_space<vmem>>, %arg7: memref<128x128xf32, #tpu.memory_space<vmem>>) attributes {dimension_semantics = [#tpu.dimension_semantics<parallel>], iteration_bounds = array<i64: 2>, scalar_prefetch = 0 : i64, scratch_operands = 0 : i64, tpu.core_type = #tpu.core_type<tc>, window_params = [{transform_indices = @transform_0, window_bounds = array<i64: 128, 128>}, {pipeline_mode = #tpu.pipeline_mode<synchronous>, transform_indices = @transform_1, window_bounds = array<i64: 128, 256>}, {pipeline_mode = #tpu.pipeline_mode<synchronous>, transform_indices = @transform_2, window_bounds = array<i64: 1, 256>}, {pipeline_mode = #tpu.pipeline_mode<synchronous>, transform_indices = @transform_3, window_bounds = array<i64: 128, 128>}, {pipeline_mode = #tpu.pipeline_mode<synchronous>, transform_indices = @transform_4, window_bounds = array<i64: 1, 128>}, {transform_indices = @transform_5, window_bounds = array<i64: 128, 128>}, {transform_indices = @transform_6, window_bounds = array<i64: 128, 128>}]} {
    %c0 = arith.constant 0 : index
    %c0_0 = arith.constant 0 : index
    %0 = vector.load %arg1[%c0, %c0_0] : memref<128x128xbf16, #tpu.memory_space<vmem>>, vector<128x128xbf16>
    %c0_1 = arith.constant 0 : index
    %c0_2 = arith.constant 0 : index
    %1 = vector.load %arg2[%c0_1, %c0_2] : memref<128x256xbf16, #tpu.memory_space<vmem>>, vector<128x256xbf16>
    %cst = arith.constant dense<0.000000e+00> : vector<128x256xf32>
    %2 = tpu.matmul %0, %1, %cst {dimension_numbers = #tpu.dot_dimension_numbers<[1], [0], [0], [1], [0, 0, 1, 1], [], []>} : vector<128x128xbf16>, vector<128x256xbf16>, vector<128x256xf32> -> vector<128x256xf32>
    %c0_3 = arith.constant 0 : index
    %c0_4 = arith.constant 0 : index
    %3 = vector.load %arg3[%c0_3, %c0_4] : memref<1x256xf32, #tpu.memory_space<vmem>>, vector<1x256xf32>
    %4 = vector.broadcast %3 : vector<1x256xf32> to vector<128x256xf32>
    %5 = arith.addf %2, %4 : vector<128x256xf32>
    %6 = vector.extract_strided_slice %5 {offsets = [0, 0], sizes = [128, 128], strides = [1, 1]} : vector<128x256xf32> to vector<128x128xf32>
    %7 = vector.extract_strided_slice %5 {offsets = [0, 128], sizes = [128, 128], strides = [1, 1]} : vector<128x256xf32> to vector<128x128xf32>
    %8 = math.exp %7 : vector<128x128xf32>
    %c0_5 = arith.constant 0 : index
    %c0_6 = arith.constant 0 : index
    %9 = vector.load %arg6[%c0_5, %c0_6] : memref<128x128xf32, #tpu.memory_space<vmem>>, vector<128x128xf32>
    %10 = arith.mulf %8, %9 : vector<128x128xf32>
    %11 = arith.addf %10, %6 : vector<128x128xf32>
    %12 = arith.truncf %11 : vector<128x128xf32> to vector<128x128xbf16>
    %c0_7 = arith.constant 0 : index
    %c0_8 = arith.constant 0 : index
    %13 = vector.load %arg4[%c0_7, %c0_8] : memref<128x128xbf16, #tpu.memory_space<vmem>>, vector<128x128xbf16>
    %cst_9 = arith.constant dense<0.000000e+00> : vector<128x128xf32>
    %14 = tpu.matmul %12, %13, %cst_9 {dimension_numbers = #tpu.dot_dimension_numbers<[1], [0], [0], [1], [0, 0, 1, 1], [], []>} : vector<128x128xbf16>, vector<128x128xbf16>, vector<128x128xf32> -> vector<128x128xf32>
    %c0_10 = arith.constant 0 : index
    %c0_11 = arith.constant 0 : index
    %15 = vector.load %arg5[%c0_10, %c0_11] : memref<1x128xf32, #tpu.memory_space<vmem>>, vector<1x128xf32>
    %16 = vector.broadcast %15 : vector<1x128xf32> to vector<128x128xf32>
    %17 = arith.addf %14, %16 : vector<128x128xf32>
    %c0_12 = arith.constant 0 : index
    %c0_13 = arith.constant 0 : index
    %18 = vector.load %arg7[%c0_12, %c0_13] : memref<128x128xf32, #tpu.memory_space<vmem>>, vector<128x128xf32>
    tpu.vector_store %arg7[%c0_12, %c0_13], %17 {strides = array<i32>} : memref<128x128xf32, #tpu.memory_space<vmem>>, vector<128x128xf32>,
    return
  }
  func.func @transform_0(%arg0: i32) -> (i32, i32) {
    %c0_i32 = arith.constant 0 : i32
    %c0_i32_0 = arith.constant 0 : i32
    return %arg0, %c0_i32 : i32, i32
  }
  func.func @transform_1(%arg0: i32) -> (i32, i32) {
    %c0_i32 = arith.constant 0 : i32
    %c0_i32_0 = arith.constant 0 : i32
    %c0_i32_1 = arith.constant 0 : i32
    return %c0_i32, %c0_i32_0 : i32, i32
  }
  func.func @transform_2(%arg0: i32) -> (i32, i32) {
    %c0_i32 = arith.constant 0 : i32
    %c0_i32_0 = arith.constant 0 : i32
    %c0_i32_1 = arith.constant 0 : i32
    return %c0_i32, %c0_i32_0 : i32, i32
  }
  func.func @transform_3(%arg0: i32) -> (i32, i32) {
    %c0_i32 = arith.constant 0 : i32
    %c0_i32_0 = arith.constant 0 : i32
    %c0_i32_1 = arith.constant 0 : i32
    return %c0_i32, %c0_i32_0 : i32, i32
  }
  func.func @transform_4(%arg0: i32) -> (i32, i32) {
    %c0_i32 = arith.constant 0 : i32
    %c0_i32_0 = arith.constant 0 : i32
    %c0_i32_1 = arith.constant 0 : i32
    return %c0_i32, %c0_i32_0 : i32, i32
  }
  func.func @transform_5(%arg0: i32) -> (i32, i32) {
    %c0_i32 = arith.constant 0 : i32
    %c0_i32_0 = arith.constant 0 : i32
    return %arg0, %c0_i32 : i32, i32
  }
  func.func @transform_6(%arg0: i32) -> (i32, i32) {
    %c0_i32 = arith.constant 0 : i32
    %c0_i32_0 = arith.constant 0 : i32
    return %arg0, %c0_i32 : i32, i32
  }
}

</mosaic_0001>

<llo_original>
// kernel: tpu_custom_call.1
$region0: #{tpu_custom_call.1}
  #allocation0 [shape = 'u32[]', space=smem, size = 0x4, offset = 0x4, fixed_abs, tag = 'smem constant byte address 0x4 - core index']
  #allocation1 [shape = 'u32[144,128]{1,0:T(1,128)}', space=vmem, size = 0x12000, scoped, tag = 'internal scratch']
  %s0 = inlined_call_operand.hbm [shape: bf16[256,128], index: 0, kind: input, shape index: {}]
  %s1 = inlined_call_operand.hbm [shape: bf16[128,256], index: 1, kind: input, shape index: {}]
  %s2 = inlined_call_operand.vmem [shape: f32[1,256], index: 2, kind: input, shape index: {}]
  %s3 = inlined_call_operand.hbm [shape: bf16[128,128], index: 3, kind: input, shape index: {}]
  %s4 = inlined_call_operand.vmem [shape: f32[1,128], index: 4, kind: input, shape index: {}]
  %s5 = inlined_call_operand.hbm [shape: f32[256,128], index: 5, kind: input, shape index: {}]
  %s6 = inlined_call_operand.hbm [shape: f32[256,128], index: 6, kind: output, shape index: {}]
  %s7 = sld [smem:[#allocation0]]
  $region73: #{tpu_custom_call.1} parent=0
    _
  %s9 = ssub.s32 1, %s7
  %s10 = scalar_select 0, %s9, %s7
  $region1: #{tpu_custom_call.1} parent=0
    #allocation2 [shape = 'u8[65536]{0}', space=vmem, size = 0x10000, scoped, tag = 'input window, operand 0']
    #allocation3 [shape = 's32[2]{0}', space=sflag, size = 0x8, scoped, tag = 'scoped memory for tpu_custom_call.1']
    #allocation4 [shape = 's32[2]{0}', space=sflag, size = 0x8, scoped, tag = 'scoped memory for tpu_custom_call.1']
    #allocation5 [shape = 'u8[65536]{0}', space=vmem, size = 0x10000, scoped, tag = 'input window, operand 1, single buffered']
    #allocation6 [shape = 's32[1]{0}', space=sflag, size = 0x4, scoped, tag = 'scoped memory for tpu_custom_call.1']
    #allocation7 [shape = 'u8[32768]{0}', space=vmem, size = 0x8000, scoped, tag = 'input window, operand 3, single buffered']
    #allocation8 [shape = 'u8[131072]{0}', space=vmem, size = 0x20000, scoped, tag = 'input window, operand 5']
    #allocation9 [shape = 's32[2]{0}', space=sflag, size = 0x8, scoped, tag = 'scoped memory for tpu_custom_call.1']
    #allocation10 [shape = 'u8[131072]{0}', space=vmem, size = 0x20000, scoped, tag = 'output window, operand 0']
    %11 = vsyncpa [#allocation3], 0
    %s12 = scalar_lea.sflag [#allocation3], 1
    %13 = vsyncpa %s12, 0
    %14 = vsyncpa [#allocation6], 0
    %15 = vsyncpa [#allocation9], 0
    %s16 = scalar_lea.sflag [#allocation9], 1
    %17 = vsyncpa %s16, 0
    %18 = vsyncpa [#allocation4], 0
    %s19 = scalar_lea.sflag [#allocation4], 1
    %20 = vsyncpa %s19, 0
    loop: start=0, step=1, limit=4
    $region2: #{tpu_custom_call.1} parent=1 // loop_pre_header
      _
    $region3: #{tpu_custom_call.1} parent=1 // loop_header
      %s22 = sphi 0, %s26
      %p23 = scmp.ge.s32.totalorder %s22, 4
      %s32 = sphi 0, %s34
      %s35 = sphi 0, %s32
      %s36 = sphi 0, %s35
      %s52 = sphi 0, %s36
      %s56 = sphi 0, %s56
      %s58 = sphi 0, %s56
      %s59 = sphi 0, %s58
      %s73 = sphi 0, %s59
      %s77 = sphi 0, %s77
      %s79 = sphi 0, %s77
      %s80 = sphi 0, %s79
      %s94 = sphi 0, %s80
      %s98 = sphi 0, %s98
      %s100 = sphi 0, %s98
      %s101 = sphi 0, %s100
      %s115 = sphi 0, %s101
      %s119 = sphi 0, %s119
      %s121 = sphi 0, %s119
      %s122 = sphi 0, %s121
      %s136 = sphi 0, %s122
      %s142 = sphi 0, %s144
      %s145 = sphi 0, %s142
      %s146 = sphi 0, %s145
      %s162 = sphi 0, %s146
      %s168 = sphi 0, %s170
      %s171 = sphi 0, %s168
      %s172 = sphi 0, %s171
      %s188 = sphi 0, %s172
    $region4: #{tpu_custom_call.1} parent=1 // loop_header_branch
      %25 = sbr.rel (%p23) target = $region8
    $region5: #{tpu_custom_call.1} parent=1 // loop_body
      %s27 = ssub.s32 %s22, 1
      %s28 = ssub.s32 %s22, 2
      %s29 = sadd.s32 %s22, 1
      %s30 = ssub.s32 %s22, %s29
      %p31 = scmp.eq.s32.totalorder %s30, 0
      %s33 = sadd.s32 %s32, 1
      %s34 = scalar_select %p31, %s32, %s33
      %p37 = pneg %p31
      %p38 = scmp.eq.s32.totalorder %s22, 1
      %p39 = por %p37, %p38
      %p40 = scmp.ne.s32.totalorder %s32, %s35
      %p41 = scmp.eq.s32.totalorder %s22, 0
      %p42 = por %p40, %p41
      %p43 = scmp.ne.s32.totalorder %s32, %s35
      %p44 = scmp.eq.s32.totalorder %s27, 1
      %p45 = por %p43, %p44
      %p46 = scmp.ne.s32.totalorder %s35, %s36
      %p47 = scmp.eq.s32.totalorder %s27, 0
      %p48 = por %p46, %p47
      %p49 = scmp.ne.s32.totalorder %s35, %s36
      %p50 = scmp.eq.s32.totalorder %s28, 1
      %p51 = por %p49, %p50
      %p53 = scmp.ne.s32.totalorder %s36, %s52
      %p54 = scmp.eq.s32.totalorder %s28, 0
      %p55 = por %p53, %p54
      %s57 = sadd.s32 %s56, 1
      %p60 = scmp.eq.s32.totalorder %s22, 1
      %p61 = scmp.ne.s32.totalorder %s56, %s58
      %p62 = scmp.eq.s32.totalorder %s22, 0
      %p63 = por %p61, %p62
      %p64 = scmp.ne.s32.totalorder %s56, %s58
      %p65 = scmp.eq.s32.totalorder %s27, 1
      %p66 = por %p64, %p65
      %p67 = scmp.ne.s32.totalorder %s58, %s59
      %p68 = scmp.eq.s32.totalorder %s27, 0
      %p69 = por %p67, %p68
      %p70 = scmp.ne.s32.totalorder %s58, %s59
      %p71 = scmp.eq.s32.totalorder %s28, 1
      %p72 = por %p70, %p71
      %p74 = scmp.ne.s32.totalorder %s59, %s73
      %p75 = scmp.eq.s32.totalorder %s28, 0
      %p76 = por %p74, %p75
      %s78 = sadd.s32 %s77, 1
      %p81 = scmp.eq.s32.totalorder %s22, 1
      %p82 = scmp.ne.s32.totalorder %s77, %s79
      %p83 = scmp.eq.s32.totalorder %s22, 0
      %p84 = por %p82, %p83
      %p85 = scmp.ne.s32.totalorder %s77, %s79
      %p86 = scmp.eq.s32.totalorder %s27, 1
      %p87 = por %p85, %p86
      %p88 = scmp.ne.s32.totalorder %s79, %s80
      %p89 = scmp.eq.s32.totalorder %s27, 0
      %p90 = por %p88, %p89
      %p91 = scmp.ne.s32.totalorder %s79, %s80
      %p92 = scmp.eq.s32.totalorder %s28, 1
      %p93 = por %p91, %p92
      %p95 = scmp.ne.s32.totalorder %s80, %s94
      %p96 = scmp.eq.s32.totalorder %s28, 0
      %p97 = por %p95, %p96
      %s99 = sadd.s32 %s98, 1
      %p102 = scmp.eq.s32.totalorder %s22, 1
      %p103 = scmp.ne.s32.totalorder %s98, %s100
      %p104 = scmp.eq.s32.totalorder %s22, 0
      %p105 = por %p103, %p104
      %p106 = scmp.ne.s32.totalorder %s98, %s100
      %p107 = scmp.eq.s32.totalorder %s27, 1
      %p108 = por %p106, %p107
      %p109 = scmp.ne.s32.totalorder %s100, %s101
      %p110 = scmp.eq.s32.totalorder %s27, 0
      %p111 = por %p109, %p110
      %p112 = scmp.ne.s32.totalorder %s100, %s101
      %p113 = scmp.eq.s32.totalorder %s28, 1
      %p114 = por %p112, %p113
      %p116 = scmp.ne.s32.totalorder %s101, %s115
      %p117 = scmp.eq.s32.totalorder %s28, 0
      %p118 = por %p116, %p117
      %s120 = sadd.s32 %s119, 1
      %p123 = scmp.eq.s32.totalorder %s22, 1
      %p124 = scmp.ne.s32.totalorder %s119, %s121
      %p125 = scmp.eq.s32.totalorder %s22, 0
      %p126 = por %p124, %p125
      %p127 = scmp.ne.s32.totalorder %s119, %s121
      %p128 = scmp.eq.s32.totalorder %s27, 1
      %p129 = por %p127, %p128
      %p130 = scmp.ne.s32.totalorder %s121, %s122
      %p131 = scmp.eq.s32.totalorder %s27, 0
      %p132 = por %p130, %p131
      %p133 = scmp.ne.s32.totalorder %s121, %s122
      %p134 = scmp.eq.s32.totalorder %s28, 1
      %p135 = por %p133, %p134
      %p137 = scmp.ne.s32.totalorder %s122, %s136
      %p138 = scmp.eq.s32.totalorder %s28, 0
      %p139 = por %p137, %p138
      %s140 = ssub.s32 %s22, %s29
      %p141 = scmp.eq.s32.totalorder %s140, 0
      %s143 = sadd.s32 %s142, 1
      %s144 = scalar_select %p141, %s142, %s143
      %p147 = pneg %p141
      %p148 = scmp.eq.s32.totalorder %s22, 1
      %p149 = por %p147, %p148
      %p150 = scmp.ne.s32.totalorder %s142, %s145
      %p151 = scmp.eq.s32.totalorder %s22, 0
      %p152 = por %p150, %p151
      %p153 = scmp.ne.s32.totalorder %s142, %s145
      %p154 = scmp.eq.s32.totalorder %s27, 1
      %p155 = por %p153, %p154
      %p156 = scmp.ne.s32.totalorder %s145, %s146
      %p157 = scmp.eq.s32.totalorder %s27, 0
      %p158 = por %p156, %p157
      %p159 = scmp.ne.s32.totalorder %s145, %s146
      %p160 = scmp.eq.s32.totalorder %s28, 1
      %p161 = por %p159, %p160
      %p163 = scmp.ne.s32.totalorder %s146, %s162
      %p164 = scmp.eq.s32.totalorder %s28, 0
      %p165 = por %p163, %p164
      %s166 = ssub.s32 %s22, %s29
      %p167 = scmp.eq.s32.totalorder %s166, 0
      %s169 = sadd.s32 %s168, 1
      %s170 = scalar_select %p167, %s168, %s169
      %p173 = pneg %p167
      %p174 = scmp.eq.s32.totalorder %s22, 1
      %p175 = por %p173, %p174
      %p176 = scmp.ne.s32.totalorder %s168, %s171
      %p177 = scmp.eq.s32.totalorder %s22, 0
      %p178 = por %p176, %p177
      %p179 = scmp.ne.s32.totalorder %s168, %s171
      %p180 = scmp.eq.s32.totalorder %s27, 1
      %p181 = por %p179, %p180
      %p182 = scmp.ne.s32.totalorder %s171, %s172
      %p183 = scmp.eq.s32.totalorder %s27, 0
      %p184 = por %p182, %p183
      %p185 = scmp.ne.s32.totalorder %s171, %s172
      %p186 = scmp.eq.s32.totalorder %s28, 1
      %p187 = por %p185, %p186
      %p189 = scmp.ne.s32.totalorder %s172, %s188
      %p190 = scmp.eq.s32.totalorder %s28, 0
      %p191 = por %p189, %p190
      %p192 = scmp.le.s32.totalorder 1, %s22
      %p193 = scmp.lt.s32.totalorder %s22, 3
      %p194 = pnand %p192, %p193
      %p195 = pneg %p194
      // Predicated region
      $region9: #{tpu_custom_call.1} parent=5 // pred_check
        _
      $region10: #{tpu_custom_call.1} parent=5 // pred_check_branch
        %197 = sbr.rel (%p194) target = $region12
      $region11: #{tpu_custom_call.1} parent=5 // pred_region
        %s198 = ssub.s32 %s22, 1
        // Predicated region
        $region13: #{tpu_custom_call.1} parent=11 // pred_check
          %p199 = pneg %p69
        $region14: #{tpu_custom_call.1} parent=11 // pred_check_branch
          %201 = sbr.rel (%p199) target = $region16
        $region15: #{tpu_custom_call.1} parent=11 // pred_region
          %s203 = ssub.s32 2048, 2048
          %204 = vsyncadd [#allocation6], %s203
          %s205 = sshll.u32 [#allocation5], 4
          %s206 = int_to_ptr.vmem [resolvable:$true] %s205
          %211 = dma.hbm_to_vmem [thread:$0]  %s1, 2048, %s206, [#allocation6], 128, 128, 8
        $region16: #{tpu_custom_call.1} parent=11 // pred_fallthru
          _
        // Predicated region
        $region17: #{tpu_custom_call.1} parent=11 // pred_check
          %p212 = pneg %p90
        $region18: #{tpu_custom_call.1} parent=11 // pred_check_branch
          %214 = sbr.rel (%p212) target = $region20
        $region19: #{tpu_custom_call.1} parent=11 // pred_region
          _
        $region20: #{tpu_custom_call.1} parent=11 // pred_fallthru
          _
        // Predicated region
        $region21: #{tpu_custom_call.1} parent=11 // pred_check
          %p215 = pneg %p111
        $region22: #{tpu_custom_call.1} parent=11 // pred_check_branch
          %217 = sbr.rel (%p215) target = $region24
        $region23: #{tpu_custom_call.1} parent=11 // pred_region
          %s219 = ssub.s32 1024, 1024
          %220 = vsyncadd [#allocation6], %s219
          %s221 = sshll.u32 [#allocation7], 4
          %s222 = int_to_ptr.vmem [resolvable:$true] %s221
          %227 = dma.hbm_to_vmem [thread:$0]  %s3, 1024, %s222, [#allocation6], 64, 64, 4
        $region24: #{tpu_custom_call.1} parent=11 // pred_fallthru
          _
        // Predicated region
        $region25: #{tpu_custom_call.1} parent=11 // pred_check
          %p228 = pneg %p132
        $region26: #{tpu_custom_call.1} parent=11 // pred_check_branch
          %230 = sbr.rel (%p228) target = $region28
        $region27: #{tpu_custom_call.1} parent=11 // pred_region
          _
        $region28: #{tpu_custom_call.1} parent=11 // pred_fallthru
          _
      $region12: #{tpu_custom_call.1} parent=5 // pred_fallthru
        _
      %p231 = scmp.lt.s32.totalorder %s22, 2
      // Predicated region
      $region29: #{tpu_custom_call.1} parent=5 // pred_check
        %p232 = pneg %p231
      $region30: #{tpu_custom_call.1} parent=5 // pred_check_branch
        %234 = sbr.rel (%p232) target = $region32
      $region31: #{tpu_custom_call.1} parent=5 // pred_region
        // Predicated region
        $region33: #{tpu_custom_call.1} parent=31 // pred_check
          %p235 = pneg %p42
        $region34: #{tpu_custom_call.1} parent=31 // pred_check_branch
          %237 = sbr.rel (%p235) target = $region36
        $region35: #{tpu_custom_call.1} parent=31 // pred_region
          %s238 = sand.u32 %s32, 1
          %s239 = scalar_lea.sflag [#allocation3], %s238
          %s240 = sand.u32 %s32, 1
          %s241 = smul.addr %s240, 64
          %s242 = scalar_lea.vmem [#allocation2], %s241
          %s243 = smul.u32 16, %s22
          %s245 = ssub.s32 1024, 1024
          %246 = vsyncadd %s239, %s245
          %s247 = smul.addr %s243, 64
          %s248 = scalar_lea.hbm %s0, %s247
          %s249 = sshll.u32 %s242, 4
          %s250 = int_to_ptr.vmem [resolvable:$true] %s249
          %255 = dma.hbm_to_vmem [thread:$0]  %s248, 1024, %s250, %s239, 64, 64, 4
        $region36: #{tpu_custom_call.1} parent=31 // pred_fallthru
          _
        // Predicated region
        $region37: #{tpu_custom_call.1} parent=31 // pred_check
          %p256 = pneg %p152
        $region38: #{tpu_custom_call.1} parent=31 // pred_check_branch
          %258 = sbr.rel (%p256) target = $region40
        $region39: #{tpu_custom_call.1} parent=31 // pred_region
          %s259 = sand.u32 %s142, 1
          %s260 = scalar_lea.sflag [#allocation9], %s259
          %s261 = sand.u32 %s142, 1
          %s262 = smul.addr %s261, 128
          %s263 = scalar_lea.vmem [#allocation8], %s262
          %s264 = smul.u32 16, %s22
          %s266 = ssub.s32 2048, 2048
          %267 = vsyncadd %s260, %s266
          %s268 = smul.addr %s264, 128
          %s269 = scalar_lea.hbm %s5, %s268
          %s270 = sshll.u32 %s263, 4
          %s271 = int_to_ptr.vmem [resolvable:$true] %s270
          %276 = dma.hbm_to_vmem [thread:$0]  %s269, 2048, %s271, %s260, 128, 128, 8
        $region40: #{tpu_custom_call.1} parent=31 // pred_fallthru
          _
      $region32: #{tpu_custom_call.1} parent=5 // pred_fallthru
        _
      %p277 = scmp.le.s32.totalorder 1, %s22
      %p278 = scmp.lt.s32.totalorder %s22, 3
      %p279 = pnand %p277, %p278
      %p280 = pneg %p279
      // Predicated region
      $region41: #{tpu_custom_call.1} parent=5 // pred_check
        _
      $region42: #{tpu_custom_call.1} parent=5 // pred_check_branch
        %282 = sbr.rel (%p279) target = $region44
      $region43: #{tpu_custom_call.1} parent=5 // pred_region
        %s283 = ssub.s32 %s22, 1
        %s284 = sand.u32 %s35, 1
        %s285 = scalar_lea.sflag [#allocation3], %s284
        %s286 = sand.u32 %s35, 1
        %s287 = smul.addr %s286, 64
        %s288 = scalar_lea.vmem [#allocation2], %s287
        // Predicated region
        $region45: #{tpu_custom_call.1} parent=43 // pred_check
          %p289 = pneg %p48
        $region46: #{tpu_custom_call.1} parent=43 // pred_check_branch
          %291 = sbr.rel (%p289) target = $region48
        $region47: #{tpu_custom_call.1} parent=43 // pred_region
          %292 = dma.done %s285, 1024
        $region48: #{tpu_custom_call.1} parent=43 // pred_fallthru
          _
        // Predicated region
        $region49: #{tpu_custom_call.1} parent=43 // pred_check
          %p293 = pneg %p69
        $region50: #{tpu_custom_call.1} parent=43 // pred_check_branch
          %295 = sbr.rel (%p293) target = $region52
        $region51: #{tpu_custom_call.1} parent=43 // pred_region
          %296 = dma.done [#allocation6], 2048
        $region52: #{tpu_custom_call.1} parent=43 // pred_fallthru
          _
        // Predicated region
        $region53: #{tpu_custom_call.1} parent=43 // pred_check
          %p297 = pneg %p111
        $region54: #{tpu_custom_call.1} parent=43 // pred_check_branch
          %299 = sbr.rel (%p297) target = $region56
        $region55: #{tpu_custom_call.1} parent=43 // pred_region
          %300 = dma.done [#allocation6], 1024
        $region56: #{tpu_custom_call.1} parent=43 // pred_fallthru
          _
        %s301 = sand.u32 %s145, 1
        %s302 = scalar_lea.sflag [#allocation9], %s301
        %s303 = sand.u32 %s145, 1
        %s304 = smul.addr %s303, 128
        %s305 = scalar_lea.vmem [#allocation8], %s304
        // Predicated region
        $region57: #{tpu_custom_call.1} parent=43 // pred_check
          %p306 = pneg %p158
        $region58: #{tpu_custom_call.1} parent=43 // pred_check_branch
          %308 = sbr.rel (%p306) target = $region60
        $region59: #{tpu_custom_call.1} parent=43 // pred_region
          %309 = dma.done %s302, 2048
        $region60: #{tpu_custom_call.1} parent=43 // pred_fallthru
          _
        %s310 = sand.u32 %s35, 1
        %s311 = scalar_lea.sflag [#allocation3], %s310
        %s312 = sand.u32 %s35, 1
        %s313 = smul.addr %s312, 64
        %s314 = scalar_lea.vmem [#allocation2], %s313
        %p315 = pneg %p48
        %p316 = pneg %p45
        %p317 = pneg %p69
        %p318 = pneg %p66
        %p319 = pneg %p90
        %p320 = pneg %p87
        %p321 = pneg %p111
        %p322 = pneg %p108
        %p323 = pneg %p132
        %p324 = pneg %p129
        %s325 = sand.u32 %s145, 1
        %s326 = scalar_lea.sflag [#allocation9], %s325
        %s327 = sand.u32 %s145, 1
        %s328 = smul.addr %s327, 128
        %s329 = scalar_lea.vmem [#allocation8], %s328
        %p330 = pneg %p158
        %p331 = pneg %p155
        %p332 = pneg %p184
        %p333 = pneg %p181
        %s334 = sand.u32 %s171, 1
        %s335 = scalar_lea.sflag [#allocation4], %s334
        %s336 = sand.u32 %s171, 1
        %s337 = smul.addr %s336, 128
        %s338 = scalar_lea.vmem [#allocation10], %s337
        %s339 = smul.u32 16, %s27
        %s340 = smul.u32 16, %s27
        %s341 = smul.u32 16, %s27
        %v343 = vld [vmem:[%s288] sm:$0xf]
        %v344 = vld [vmem:[%s288 + $0x4] sm:$0xf]
        %v345 = vld [vmem:[%s288 + $0x8] sm:$0xf]
        %v346 = vld [vmem:[%s288 + $0xc] sm:$0xf]
        %v347 = vld [vmem:[%s288 + $0x10] sm:$0xf]
        %v348 = vld [vmem:[%s288 + $0x14] sm:$0xf]
        %v349 = vld [vmem:[%s288 + $0x18] sm:$0xf]
        %v350 = vld [vmem:[%s288 + $0x1c] sm:$0xf]
        %v351 = vld [vmem:[%s288 + $0x20] sm:$0xf]
        %v352 = vld [vmem:[%s288 + $0x24] sm:$0xf]
        %v353 = vld [vmem:[%s288 + $0x28] sm:$0xf]
        %v354 = vld [vmem:[%s288 + $0x2c] sm:$0xf]
        %v355 = vld [vmem:[%s288 + $0x30] sm:$0xf]
        %v356 = vld [vmem:[%s288 + $0x34] sm:$0xf]
        %v357 = vld [vmem:[%s288 + $0x38] sm:$0xf]
        %v358 = vld [vmem:[%s288 + $0x3c] sm:$0xf]
        %v359 = vld [vmem:[#allocation5] sm:$0xff]
        %v360 = vld [vmem:[#allocation5 + $0x8] sm:$0xff]
        %v361 = vld [vmem:[#allocation5 + $0x10] sm:$0xff]
        %v362 = vld [vmem:[#allocation5 + $0x18] sm:$0xff]
        %v363 = vld [vmem:[#allocation5 + $0x20] sm:$0xff]
        %v364 = vld [vmem:[#allocation5 + $0x28] sm:$0xff]
        %v365 = vld [vmem:[#allocation5 + $0x30] sm:$0xff]
        %v366 = vld [vmem:[#allocation5 + $0x38] sm:$0xff]
        %v367 = vld [vmem:[#allocation5 + $0x40] sm:$0xff]
        %v368 = vld [vmem:[#allocation5 + $0x48] sm:$0xff]
        %v369 = vld [vmem:[#allocation5 + $0x50] sm:$0xff]
        %v370 = vld [vmem:[#allocation5 + $0x58] sm:$0xff]
        %v371 = vld [vmem:[#allocation5 + $0x60] sm:$0xff]
        %v372 = vld [vmem:[#allocation5 + $0x68] sm:$0xff]
        %v373 = vld [vmem:[#allocation5 + $0x70] sm:$0xff]
        %v374 = vld [vmem:[#allocation5 + $0x78] sm:$0xff]
        %v375 = vld [vmem:[%s2] sm:$0x3]
        %v377 = vlaneseq
        %v378 = vshrl.u32 %v377, 7
        %v379 = vsub.s32 0, %v378
        %v380 = vrot.slane %v375, %v379
        %v381 = vlaneseq
        %v382 = vshrl.u32 %v381, 7
        %v383 = vsub.s32 1, %v382
        %v384 = vrot.slane %v375, %v383
        %v403 = vunpack.c.l.b16 %v343
        %v404 = vunpack.c.l.b16 %v344
        %v405 = vunpack.c.l.b16 %v345
        %v406 = vunpack.c.l.b16 %v346
        %v407 = vunpack.c.l.b16 %v347
        %v408 = vunpack.c.l.b16 %v348
        %v409 = vunpack.c.l.b16 %v349
        %v410 = vunpack.c.l.b16 %v350
        %v411 = vunpack.c.l.b16 %v351
        %v412 = vunpack.c.l.b16 %v352
        %v413 = vunpack.c.l.b16 %v353
        %v414 = vunpack.c.l.b16 %v354
        %v415 = vunpack.c.l.b16 %v355
        %v416 = vunpack.c.l.b16 %v356
        %v417 = vunpack.c.l.b16 %v357
        %v418 = vunpack.c.l.b16 %v358
        %v419 = vpack.c.b16 %v404, %v403
        %v420 = vpack.c.b16 %v406, %v405
        %v421 = vpack.c.b16 %v408, %v407
        %v422 = vpack.c.b16 %v410, %v409
        %v423 = vpack.c.b16 %v412, %v411
        %v424 = vpack.c.b16 %v414, %v413
        %v425 = vpack.c.b16 %v416, %v415
        %v426 = vpack.c.b16 %v418, %v417
        %v451 = vunpack.c.l.b16 %v359
        %v452 = vunpack.c.h.b16 %v359
        %v453 = vunpack.c.l.b16 %v360
        %v454 = vunpack.c.h.b16 %v360
        %v455 = vunpack.c.l.b16 %v361
        %v456 = vunpack.c.h.b16 %v361
        %v457 = vunpack.c.l.b16 %v362
        %v458 = vunpack.c.h.b16 %v362
        %v459 = vunpack.c.l.b16 %v363
        %v460 = vunpack.c.h.b16 %v363
        %v461 = vunpack.c.l.b16 %v364
        %v462 = vunpack.c.h.b16 %v364
        %v463 = vunpack.c.l.b16 %v365
        %v464 = vunpack.c.h.b16 %v365
        %v465 = vunpack.c.l.b16 %v366
        %v466 = vunpack.c.h.b16 %v366
        %v467 = vunpack.c.l.b16 %v367
        %v468 = vunpack.c.h.b16 %v367
        %v469 = vunpack.c.l.b16 %v368
        %v470 = vunpack.c.h.b16 %v368
        %v471 = vunpack.c.l.b16 %v369
        %v472 = vunpack.c.h.b16 %v369
        %v473 = vunpack.c.l.b16 %v370
        %v474 = vunpack.c.h.b16 %v370
        %v475 = vunpack.c.l.b16 %v371
        %v476 = vunpack.c.h.b16 %v371
        %v477 = vunpack.c.l.b16 %v372
        %v478 = vunpack.c.h.b16 %v372
        %v479 = vunpack.c.l.b16 %v373
        %v480 = vunpack.c.h.b16 %v373
        %v481 = vunpack.c.l.b16 %v374
        %v482 = vunpack.c.h.b16 %v374
        %v483 = vpack.c.b16 %v453, %v451
        %v484 = vpack.c.b16 %v454, %v452
        %v485 = vpack.c.b16 %v457, %v455
        %v486 = vpack.c.b16 %v458, %v456
        %v487 = vpack.c.b16 %v461, %v459
        %v488 = vpack.c.b16 %v462, %v460
        %v489 = vpack.c.b16 %v465, %v463
        %v490 = vpack.c.b16 %v466, %v464
        %v491 = vpack.c.b16 %v469, %v467
        %v492 = vpack.c.b16 %v470, %v468
        %v493 = vpack.c.b16 %v473, %v471
        %v494 = vpack.c.b16 %v474, %v472
        %v495 = vpack.c.b16 %v477, %v475
        %v496 = vpack.c.b16 %v478, %v476
        %v497 = vpack.c.b16 %v481, %v479
        %v498 = vpack.c.b16 %v482, %v480
        %515 = vmatprep.subr.bf16.mxu0 %v498
        %516 = vmatpush1.bf16.msra.mxu0 %v497
        %517 = vmatprep.subr.bf16.mxu0 %v496
        %518 = vmatpush1.bf16.msra.mxu0 %v495
        %519 = vmatprep.subr.bf16.mxu0 %v494
        %520 = vmatpush1.bf16.msra.mxu0 %v493
        %521 = vmatprep.subr.bf16.mxu0 %v492
        %522 = vmatpush1.bf16.msra.mxu0 %v491
        %523 = vmatprep.subr.bf16.mxu0 %v490
        %524 = vmatpush1.bf16.msra.mxu0 %v489
        %525 = vmatprep.subr.bf16.mxu0 %v488
        %526 = vmatpush1.bf16.msra.mxu0 %v487
        %527 = vmatprep.subr.bf16.mxu0 %v486
        %528 = vmatpush1.bf16.msra.mxu0 %v485
        %529 = vmatprep.subr.bf16.mxu0 %v484
        %530 = vmatpush1.bf16.msra.mxu0 %v483
        %531 = vmatprep.subr.bf16.mxu0 0
        %532 = vmatpush2.bf16.msra.mxu0 0
        %533 = vmatprep.subr.bf16.mxu0 0
        %534 = vmatpush2.bf16.msra.mxu0 0
        %535 = vmatprep.subr.bf16.mxu0 0
        %536 = vmatpush2.bf16.msra.mxu0 0
        %537 = vmatprep.subr.bf16.mxu0 0
        %538 = vmatpush2.bf16.msra.mxu0 0
        %539 = vmatprep.subr.bf16.mxu0 0
        %540 = vmatpush2.bf16.msra.mxu0 0
        %541 = vmatprep.subr.bf16.mxu0 0
        %542 = vmatpush2.bf16.msra.mxu0 0
        %543 = vmatprep.subr.bf16.mxu0 0
        %544 = vmatpush2.bf16.msra.mxu0 0
        %545 = vmatprep.subr.bf16.mxu0 0
        %546 = vmatpush2.bf16.msra.mxu0 0
        %547 = vmatprep.mubr.bf16.mxu0 0
        %548 = vmatmul.mubr.bf16.gmra.mxu0 %v419
        %v549 = vpop.f32.mrf.mxu0
        %v550 = vadd.f32 %v380, %v549
        %v551 = vpop.f32.mrf.mxu0
        %v552 = vadd.f32 %v384, %v551
        %v553 = vpop.f32.mrf.mxu0
        %v554 = vadd.f32 %v380, %v553
        %v555 = vpop.f32.mrf.mxu0
        %v556 = vadd.f32 %v384, %v555
        %557 = vmatprep.mubr.bf16.mxu0 0
        %558 = vmatmul.mubr.bf16.gmra.mxu0 %v420
        %v559 = vpop.f32.mrf.mxu0
        %v560 = vadd.f32 %v380, %v559
        %v561 = vpop.f32.mrf.mxu0
        %v562 = vadd.f32 %v384, %v561
        %v563 = vpop.f32.mrf.mxu0
        %v564 = vadd.f32 %v380, %v563
        %v565 = vpop.f32.mrf.mxu0
        %v566 = vadd.f32 %v384, %v565
        %567 = vmatprep.mubr.bf16.mxu0 0
        %568 = vmatmul.mubr.bf16.gmra.mxu0 %v421
        %v569 = vpop.f32.mrf.mxu0
        %v570 = vadd.f32 %v380, %v569
        %v571 = vpop.f32.mrf.mxu0
        %v572 = vadd.f32 %v384, %v571
        %v573 = vpop.f32.mrf.mxu0
        %v574 = vadd.f32 %v380, %v573
        %v575 = vpop.f32.mrf.mxu0
        %v576 = vadd.f32 %v384, %v575
        %577 = vmatprep.mubr.bf16.mxu0 0
        %578 = vmatmul.mubr.bf16.gmra.mxu0 %v422
        %v579 = vpop.f32.mrf.mxu0
        %v580 = vadd.f32 %v380, %v579
        %v581 = vpop.f32.mrf.mxu0
        %v582 = vadd.f32 %v384, %v581
        %v583 = vpop.f32.mrf.mxu0
        %v584 = vadd.f32 %v380, %v583
        %v585 = vpop.f32.mrf.mxu0
        %v586 = vadd.f32 %v384, %v585
        %587 = vmatprep.mubr.bf16.mxu0 0
        %588 = vmatmul.mubr.bf16.gmra.mxu0 %v423
        %v589 = vpop.f32.mrf.mxu0
        %v590 = vadd.f32 %v380, %v589
        %v591 = vpop.f32.mrf.mxu0
        %v592 = vadd.f32 %v384, %v591
        %v593 = vpop.f32.mrf.mxu0
        %v594 = vadd.f32 %v380, %v593
        %v595 = vpop.f32.mrf.mxu0
        %v596 = vadd.f32 %v384, %v595
        %597 = vmatprep.mubr.bf16.mxu0 0
        %598 = vmatmul.mubr.bf16.gmra.mxu0 %v424
        %v599 = vpop.f32.mrf.mxu0
        %v600 = vadd.f32 %v380, %v599
        %v601 = vpop.f32.mrf.mxu0
        %v602 = vadd.f32 %v384, %v601
        %v603 = vpop.f32.mrf.mxu0
        %v604 = vadd.f32 %v380, %v603
        %v605 = vpop.f32.mrf.mxu0
        %v606 = vadd.f32 %v384, %v605
        %607 = vmatprep.mubr.bf16.mxu0 0
        %608 = vmatmul.mubr.bf16.gmra.mxu0 %v425
        %v609 = vpop.f32.mrf.mxu0
        %v610 = vadd.f32 %v380, %v609
        %v611 = vpop.f32.mrf.mxu0
        %v612 = vadd.f32 %v384, %v611
        %v613 = vpop.f32.mrf.mxu0
        %v614 = vadd.f32 %v380, %v613
        %v615 = vpop.f32.mrf.mxu0
        %v616 = vadd.f32 %v384, %v615
        %617 = vmatprep.mubr.bf16.mxu0 0
        %618 = vmatmul.mubr.bf16.gmra.mxu0 %v426
        %v619 = vpop.f32.mrf.mxu0
        %v620 = vadd.f32 %v380, %v619
        %v621 = vpop.f32.mrf.mxu0
        %v622 = vadd.f32 %v384, %v621
        %v623 = vpop.f32.mrf.mxu0
        %v624 = vadd.f32 %v380, %v623
        %v625 = vpop.f32.mrf.mxu0
        %v626 = vadd.f32 %v384, %v625
        %627 = vdwg.mxu0
        %v628 = vmul.f32 %v552, 1.442695
        %v629 = vpow.pop %v628
        %v630 = vmul.f32 %v556, 1.442695
        %v631 = vpow.pop %v630
        %v632 = vmul.f32 %v562, 1.442695
        %v633 = vpow.pop %v632
        %v634 = vmul.f32 %v566, 1.442695
        %v635 = vpow.pop %v634
        %v636 = vmul.f32 %v572, 1.442695
        %v637 = vpow.pop %v636
        %v638 = vmul.f32 %v576, 1.442695
        %v639 = vpow.pop %v638
        %v640 = vmul.f32 %v582, 1.442695
        %v641 = vpow.pop %v640
        %v642 = vmul.f32 %v586, 1.442695
        %v643 = vpow.pop %v642
        %v644 = vmul.f32 %v592, 1.442695
        %v645 = vpow.pop %v644
        %v646 = vmul.f32 %v596, 1.442695
        %v647 = vpow.pop %v646
        %v648 = vmul.f32 %v602, 1.442695
        %v649 = vpow.pop %v648
        %v650 = vmul.f32 %v606, 1.442695
        %v651 = vpow.pop %v650
        %v652 = vmul.f32 %v612, 1.442695
        %v653 = vpow.pop %v652
        %v654 = vmul.f32 %v616, 1.442695
        %v655 = vpow.pop %v654
        %v656 = vmul.f32 %v622, 1.442695
        %v657 = vpow.pop %v656
        %v658 = vmul.f32 %v626, 1.442695
        %v659 = vpow.pop %v658
        %v660 = vld [vmem:[%s305] sm:$0xff]
        %v661 = vld [vmem:[%s305 + $0x8] sm:$0xff]
        %v662 = vld [vmem:[%s305 + $0x10] sm:$0xff]
        %v663 = vld [vmem:[%s305 + $0x18] sm:$0xff]
        %v664 = vld [vmem:[%s305 + $0x20] sm:$0xff]
        %v665 = vld [vmem:[%s305 + $0x28] sm:$0xff]
        %v666 = vld [vmem:[%s305 + $0x30] sm:$0xff]
        %v667 = vld [vmem:[%s305 + $0x38] sm:$0xff]
        %v668 = vld [vmem:[%s305 + $0x40] sm:$0xff]
        %v669 = vld [vmem:[%s305 + $0x48] sm:$0xff]
        %v670 = vld [vmem:[%s305 + $0x50] sm:$0xff]
        %v671 = vld [vmem:[%s305 + $0x58] sm:$0xff]
        %v672 = vld [vmem:[%s305 + $0x60] sm:$0xff]
        %v673 = vld [vmem:[%s305 + $0x68] sm:$0xff]
        %v674 = vld [vmem:[%s305 + $0x70] sm:$0xff]
        %v675 = vld [vmem:[%s305 + $0x78] sm:$0xff]
        %v676 = vmul.f32 %v629, %v660
        %v677 = vmul.f32 %v631, %v661
        %v678 = vmul.f32 %v633, %v662
        %v679 = vmul.f32 %v635, %v663
        %v680 = vmul.f32 %v637, %v664
        %v681 = vmul.f32 %v639, %v665
        %v682 = vmul.f32 %v641, %v666
        %v683 = vmul.f32 %v643, %v667
        %v684 = vmul.f32 %v645, %v668
        %v685 = vmul.f32 %v647, %v669
        %v686 = vmul.f32 %v649, %v670
        %v687 = vmul.f32 %v651, %v671
        %v688 = vmul.f32 %v653, %v672
        %v689 = vmul.f32 %v655, %v673
        %v690 = vmul.f32 %v657, %v674
        %v691 = vmul.f32 %v659, %v675
        %v692 = vadd.f32 %v676, %v550
        %v693 = vadd.f32 %v677, %v554
        %v694 = vadd.f32 %v678, %v560
        %v695 = vadd.f32 %v679, %v564
        %v696 = vadd.f32 %v680, %v570
        %v697 = vadd.f32 %v681, %v574
        %v698 = vadd.f32 %v682, %v580
        %v699 = vadd.f32 %v683, %v584
        %v700 = vadd.f32 %v684, %v590
        %v701 = vadd.f32 %v685, %v594
        %v702 = vadd.f32 %v686, %v600
        %v703 = vadd.f32 %v687, %v604
        %v704 = vadd.f32 %v688, %v610
        %v705 = vadd.f32 %v689, %v614
        %v706 = vadd.f32 %v690, %v620
        %v707 = vadd.f32 %v691, %v624
        %v708 = vpack.c.bf16 %v693, %v692
        %v709 = vpack.c.bf16 %v695, %v694
        %v710 = vpack.c.bf16 %v697, %v696
        %v711 = vpack.c.bf16 %v699, %v698
        %v712 = vpack.c.bf16 %v701, %v700
        %v713 = vpack.c.bf16 %v703, %v702
        %v714 = vpack.c.bf16 %v705, %v704
        %v715 = vpack.c.bf16 %v707, %v706
        %v716 = vld [vmem:[#allocation7] sm:$0xf]
        %v717 = vld [vmem:[#allocation7 + $0x4] sm:$0xf]
        %v718 = vld [vmem:[#allocation7 + $0x8] sm:$0xf]
        %v719 = vld [vmem:[#allocation7 + $0xc] sm:$0xf]
        %v720 = vld [vmem:[#allocation7 + $0x10] sm:$0xf]
        %v721 = vld [vmem:[#allocation7 + $0x14] sm:$0xf]
        %v722 = vld [vmem:[#allocation7 + $0x18] sm:$0xf]
        %v723 = vld [vmem:[#allocation7 + $0x1c] sm:$0xf]
        %v724 = vld [vmem:[#allocation7 + $0x20] sm:$0xf]
        %v725 = vld [vmem:[#allocation7 + $0x24] sm:$0xf]
        %v726 = vld [vmem:[#allocation7 + $0x28] sm:$0xf]
        %v727 = vld [vmem:[#allocation7 + $0x2c] sm:$0xf]
        %v728 = vld [vmem:[#allocation7 + $0x30] sm:$0xf]
        %v729 = vld [vmem:[#allocation7 + $0x34] sm:$0xf]
        %v730 = vld [vmem:[#allocation7 + $0x38] sm:$0xf]
        %v731 = vld [vmem:[#allocation7 + $0x3c] sm:$0xf]
        %v732 = vld [vmem:[%s4] sm:$0x1]
        %v734 = vlaneseq
        %v735 = vshrl.u32 %v734, 7
        %v736 = vsub.s32 0, %v735
        %v737 = vrot.slane %v732, %v736
        %v755 = vunpack.c.l.b16 %v716
        %v756 = vunpack.c.l.b16 %v717
        %v757 = vunpack.c.l.b16 %v718
        %v758 = vunpack.c.l.b16 %v719
        %v759 = vunpack.c.l.b16 %v720
        %v760 = vunpack.c.l.b16 %v721
        %v761 = vunpack.c.l.b16 %v722
        %v762 = vunpack.c.l.b16 %v723
        %v763 = vunpack.c.l.b16 %v724
        %v764 = vunpack.c.l.b16 %v725
        %v765 = vunpack.c.l.b16 %v726
        %v766 = vunpack.c.l.b16 %v727
        %v767 = vunpack.c.l.b16 %v728
        %v768 = vunpack.c.l.b16 %v729
        %v769 = vunpack.c.l.b16 %v730
        %v770 = vunpack.c.l.b16 %v731
        %v771 = vpack.c.b16 %v756, %v755
        %v772 = vpack.c.b16 %v758, %v757
        %v773 = vpack.c.b16 %v760, %v759
        %v774 = vpack.c.b16 %v762, %v761
        %v775 = vpack.c.b16 %v764, %v763
        %v776 = vpack.c.b16 %v766, %v765
        %v777 = vpack.c.b16 %v768, %v767
        %v778 = vpack.c.b16 %v770, %v769
        %787 = vmatprep.subr.bf16.mxu0 0
        %788 = vmatpush1.bf16.msra.mxu0 %v778
        %789 = vmatprep.subr.bf16.mxu0 0
        %790 = vmatpush1.bf16.msra.mxu0 %v777
        %791 = vmatprep.subr.bf16.mxu0 0
        %792 = vmatpush1.bf16.msra.mxu0 %v776
        %793 = vmatprep.subr.bf16.mxu0 0
        %794 = vmatpush1.bf16.msra.mxu0 %v775
        %795 = vmatprep.subr.bf16.mxu0 0
        %796 = vmatpush1.bf16.msra.mxu0 %v774
        %797 = vmatprep.subr.bf16.mxu0 0
        %798 = vmatpush1.bf16.msra.mxu0 %v773
        %799 = vmatprep.subr.bf16.mxu0 0
        %800 = vmatpush1.bf16.msra.mxu0 %v772
        %801 = vmatprep.subr.bf16.mxu0 0
        %802 = vmatpush1.bf16.msra.mxu0 %v771
        %803 = vmatprep.subr.bf16.mxu0 0
        %804 = vmatpush2.bf16.msra.mxu0 0
        %805 = vmatprep.subr.bf16.mxu0 0
        %806 = vmatpush2.bf16.msra.mxu0 0
        %807 = vmatprep.subr.bf16.mxu0 0
        %808 = vmatpush2.bf16.msra.mxu0 0
        %809 = vmatprep.subr.bf16.mxu0 0
        %810 = vmatpush2.bf16.msra.mxu0 0
        %811 = vmatprep.subr.bf16.mxu0 0
        %812 = vmatpush2.bf16.msra.mxu0 0
        %813 = vmatprep.subr.bf16.mxu0 0
        %814 = vmatpush2.bf16.msra.mxu0 0
        %815 = vmatprep.subr.bf16.mxu0 0
        %816 = vmatpush2.bf16.msra.mxu0 0
        %817 = vmatprep.subr.bf16.mxu0 0
        %818 = vmatpush2.bf16.msra.mxu0 0
        %819 = vmatprep.mubr.bf16.mxu0 0
        %820 = vmatmul.mubr.bf16.gmra.mxu0 %v708
        %v821 = vpop.f32.mrf.mxu0
        %v822 = vadd.f32 %v737, %v821
        %v823 = vpop.f32.mrf.mxu0
        %v824 = vpop.f32.mrf.mxu0
        %v825 = vadd.f32 %v737, %v824
        %v826 = vpop.f32.mrf.mxu0
        %827 = vmatprep.mubr.bf16.mxu0 0
        %828 = vmatmul.mubr.bf16.gmra.mxu0 %v709
        %v829 = vpop.f32.mrf.mxu0
        %v830 = vadd.f32 %v737, %v829
        %v831 = vpop.f32.mrf.mxu0
        %v832 = vpop.f32.mrf.mxu0
        %v833 = vadd.f32 %v737, %v832
        %v834 = vpop.f32.mrf.mxu0
        %835 = vmatprep.mubr.bf16.mxu0 0
        %836 = vmatmul.mubr.bf16.gmra.mxu0 %v710
        %v837 = vpop.f32.mrf.mxu0
        %v838 = vadd.f32 %v737, %v837
        %v839 = vpop.f32.mrf.mxu0
        %v840 = vpop.f32.mrf.mxu0
        %v841 = vadd.f32 %v737, %v840
        %v842 = vpop.f32.mrf.mxu0
        %843 = vmatprep.mubr.bf16.mxu0 0
        %844 = vmatmul.mubr.bf16.gmra.mxu0 %v711
        %v845 = vpop.f32.mrf.mxu0
        %v846 = vadd.f32 %v737, %v845
        %v847 = vpop.f32.mrf.mxu0
        %v848 = vpop.f32.mrf.mxu0
        %v849 = vadd.f32 %v737, %v848
        %v850 = vpop.f32.mrf.mxu0
        %851 = vmatprep.mubr.bf16.mxu0 0
        %852 = vmatmul.mubr.bf16.gmra.mxu0 %v712
        %v853 = vpop.f32.mrf.mxu0
        %v854 = vadd.f32 %v737, %v853
        %v855 = vpop.f32.mrf.mxu0
        %v856 = vpop.f32.mrf.mxu0
        %v857 = vadd.f32 %v737, %v856
        %v858 = vpop.f32.mrf.mxu0
        %859 = vmatprep.mubr.bf16.mxu0 0
        %860 = vmatmul.mubr.bf16.gmra.mxu0 %v713
        %v861 = vpop.f32.mrf.mxu0
        %v862 = vadd.f32 %v737, %v861
        %v863 = vpop.f32.mrf.mxu0
        %v864 = vpop.f32.mrf.mxu0
        %v865 = vadd.f32 %v737, %v864
        %v866 = vpop.f32.mrf.mxu0
        %867 = vmatprep.mubr.bf16.mxu0 0
        %868 = vmatmul.mubr.bf16.gmra.mxu0 %v714
        %v869 = vpop.f32.mrf.mxu0
        %v870 = vadd.f32 %v737, %v869
        %v871 = vpop.f32.mrf.mxu0
        %v872 = vpop.f32.mrf.mxu0
        %v873 = vadd.f32 %v737, %v872
        %v874 = vpop.f32.mrf.mxu0
        %875 = vmatprep.mubr.bf16.mxu0 0
        %876 = vmatmul.mubr.bf16.gmra.mxu0 %v715
        %v877 = vpop.f32.mrf.mxu0
        %v878 = vadd.f32 %v737, %v877
        %v879 = vpop.f32.mrf.mxu0
        %v880 = vpop.f32.mrf.mxu0
        %v881 = vadd.f32 %v737, %v880
        %v882 = vpop.f32.mrf.mxu0
        %883 = vdwg.mxu0
        %884 = vst [vmem:[%s338] sm:$0xff] %v822
        %885 = vst [vmem:[%s338 + $0x8] sm:$0xff] %v825
        %886 = vst [vmem:[%s338 + $0x10] sm:$0xff] %v830
        %887 = vst [vmem:[%s338 + $0x18] sm:$0xff] %v833
        %888 = vst [vmem:[%s338 + $0x20] sm:$0xff] %v838
        %889 = vst [vmem:[%s338 + $0x28] sm:$0xff] %v841
        %890 = vst [vmem:[%s338 + $0x30] sm:$0xff] %v846
        %891 = vst [vmem:[%s338 + $0x38] sm:$0xff] %v849
        %892 = vst [vmem:[%s338 + $0x40] sm:$0xff] %v854
        %893 = vst [vmem:[%s338 + $0x48] sm:$0xff] %v857
        %894 = vst [vmem:[%s338 + $0x50] sm:$0xff] %v862
        %895 = vst [vmem:[%s338 + $0x58] sm:$0xff] %v865
        %896 = vst [vmem:[%s338 + $0x60] sm:$0xff] %v870
        %897 = vst [vmem:[%s338 + $0x68] sm:$0xff] %v873
        %898 = vst [vmem:[%s338 + $0x70] sm:$0xff] %v878
        %899 = vst [vmem:[%s338 + $0x78] sm:$0xff] %v881
        %s900 = sand.u32 %s171, 1
        %s901 = scalar_lea.sflag [#allocation4], %s900
        %s902 = sand.u32 %s171, 1
        %s903 = smul.addr %s902, 128
        %s904 = scalar_lea.vmem [#allocation10], %s903
        // Predicated region
        $region61: #{tpu_custom_call.1} parent=43 // pred_check
          %p905 = pneg %p181
        $region62: #{tpu_custom_call.1} parent=43 // pred_check_branch
          %907 = sbr.rel (%p905) target = $region64
        $region63: #{tpu_custom_call.1} parent=43 // pred_region
          %s908 = smul.u32 16, %s27
          %s910 = ssub.s32 2048, 2048
          %911 = vsyncadd %s901, %s910
          %s912 = smul.addr %s908, 128
          %s913 = scalar_lea.hbm %s6, %s912
          %s914 = sshll.u32 %s904, 4
          %s915 = int_to_ptr.vmem [resolvable:$true] %s914
          %920 = dma.vmem_to_hbm [thread:$0]  %s915, 2048, %s913, %s901, 128, 128, 8
        $region64: #{tpu_custom_call.1} parent=43 // pred_fallthru
          _
      $region44: #{tpu_custom_call.1} parent=5 // pred_fallthru
        _
      %p921 = scmp.le.s32.totalorder 2, %s22
      // Predicated region
      $region65: #{tpu_custom_call.1} parent=5 // pred_check
        %p922 = pneg %p921
      $region66: #{tpu_custom_call.1} parent=5 // pred_check_branch
        %924 = sbr.rel (%p922) target = $region68
      $region67: #{tpu_custom_call.1} parent=5 // pred_region
        %s925 = ssub.s32 %s22, 2
        // Predicated region
        $region69: #{tpu_custom_call.1} parent=67 // pred_check
          %p926 = pneg %p187
        $region70: #{tpu_custom_call.1} parent=67 // pred_check_branch
          %928 = sbr.rel (%p926) target = $region72
        $region71: #{tpu_custom_call.1} parent=67 // pred_region
          %s929 = sand.u32 %s172, 1
          %s930 = scalar_lea.sflag [#allocation4], %s929
          %s931 = sand.u32 %s172, 1
          %s932 = smul.addr %s931, 128
          %s933 = scalar_lea.vmem [#allocation10], %s932
          %934 = dma.done %s930, 2048
        $region72: #{tpu_custom_call.1} parent=67 // pred_fallthru
          _
      $region68: #{tpu_custom_call.1} parent=5 // pred_fallthru
        _
    $region6: #{tpu_custom_call.1} parent=1 // loop_footer
      %s26 = sadd.s32 1, %s22
    $region7: #{tpu_custom_call.1} parent=1 // loop_footer_branch
      %21 = sbr.rel target = $region3
    $region8: #{tpu_custom_call.1} parent=1 // loop_exit
      _
    %935 = vsyncpa [#allocation3], 1
    %s936 = scalar_lea.sflag [#allocation3], 1
    %937 = vsyncpa %s936, 1
    %938 = vsyncpa [#allocation6], 1
    %939 = vsyncpa [#allocation9], 1
    %s940 = scalar_lea.sflag [#allocation9], 1
    %941 = vsyncpa %s940, 1
    %942 = vsyncpa [#allocation4], 1
    %s943 = scalar_lea.sflag [#allocation4], 1
    %944 = vsyncpa %s943, 1

</llo_original>
